<compile_context>
chip_gen: v7x
topology: tpu7x:2x2x1
jax: 0.10.0
libtpu: 0.0.40
codegen_flags: <defaults>
</compile_context>

<pallas_src>
import functools

import jax
import jax.numpy as jnp
from jax.experimental import pallas as pl
from jax.experimental.pallas import tpu as pltpu


# ---------------------------------------------------------------------------
# Kernels
# ---------------------------------------------------------------------------

def _linear_kernel(x_ref, w_ref, b_ref, o_ref):
    """o = x @ w + b  (row tile of x, resident w/b, lane-dense output)."""
    y = jnp.dot(x_ref[...], w_ref[...], preferred_element_type=jnp.float32)
    y = y + b_ref[...].astype(jnp.float32)
    o_ref[...] = y.astype(o_ref.dtype)


def _mha_sdpa_kernel(q_ref, k_ref, v_ref, o_ref, attn_ref, *, inv_temperature):
    """Scaled dot-product attention over a block of (head*batch) elements."""
    # Fold the 1/temperature scale into q: O(BB*Lq*dk) instead of O(BB*Lq*Lk).
    q = q_ref[...] * inv_temperature                            # (BB, Lq, dk)
    k = k_ref[...]                                              # (BB, Lk, dk)
    v = v_ref[...]                                              # (BB, Lk, dv)

    # scores = q @ k^T -- contract last dims, no explicit transpose of k.
    scores = jax.lax.dot_general(
        q, k,
        dimension_numbers=(((2,), (2,)), ((0,), (0,))),
        preferred_element_type=jnp.float32)                     # (BB, Lq, Lk)

    # softmax over the key axis (torch: Softmax(dim=2))
    m = jnp.max(scores, axis=-1, keepdims=True)
    e = jnp.exp(scores - m)
    s = jnp.sum(e, axis=-1, keepdims=True)
    # approx=True would move the divide onto the otherwise-idle EUP slot, but
    # is kept exact here to preserve the tight comparison tolerance.
    p = e * pl.reciprocal(s, approx=False)

    attn_ref[...] = p.astype(attn_ref.dtype)

    out = jax.lax.dot_general(
        p.astype(v.dtype), v,
        dimension_numbers=(((2,), (1,)), ((0,), (0,))),
        preferred_element_type=jnp.float32)                     # (BB, Lq, dv)
    o_ref[...] = out.astype(o_ref.dtype)


def _layer_norm_f32(x, gamma, beta, eps):
    mean = jnp.mean(x, axis=-1, keepdims=True)
    xc = x - mean
    var = jnp.mean(xc * xc, axis=-1, keepdims=True)
    return xc * jax.lax.rsqrt(var + eps) * gamma + beta


def _post_attn_ffn_kernel(xcat_ref, res_ref,
                          wfc_ref, bfc_ref, g1_ref, be1_ref,
                          w1_ref, b1_ref, w2_ref, b2_ref, g2_ref, be2_ref,
                          o_ref, *, eps):
    """fc + dropout(id) + residual + LN, then FFN + dropout(id) + residual + LN."""
    xcat = xcat_ref[...]                                        # (tm, H*dv)
    res = res_ref[...].astype(jnp.float32)                      # (tm, d_model)

    # MultiHeadAttention tail: fc(concat) + residual, LayerNorm
    h = jnp.dot(xcat, wfc_ref[...], preferred_element_type=jnp.float32)
    h = h + bfc_ref[...].astype(jnp.float32) + res
    y1 = _layer_norm_f32(h, g1_ref[...].astype(jnp.float32),
                         be1_ref[...].astype(jnp.float32), eps)

    # PositionwiseFeedForward: w_2(relu(w_1(x))) + residual, LayerNorm
    f = jnp.dot(y1.astype(w1_ref.dtype), w1_ref[...],
                preferred_element_type=jnp.float32)
    f = jnp.maximum(f + b1_ref[...].astype(jnp.float32), 0.0)   # (tm, d_inner)
    f = jnp.dot(f.astype(w2_ref.dtype), w2_ref[...],
                preferred_element_type=jnp.float32)
    f = f + b2_ref[...].astype(jnp.float32)

    y2 = _layer_norm_f32(f + y1, g2_ref[...].astype(jnp.float32),
                         be2_ref[...].astype(jnp.float32), eps)
    o_ref[...] = y2.astype(o_ref.dtype)


# ---------------------------------------------------------------------------
# pallas_call wrappers
# ---------------------------------------------------------------------------

def _pick_row_tile(rows):
    # Largest lane-friendly row tile; a single full block is legal when rows
    # is small (block == full array extent).
    for t in (512, 256, 128):
        if rows % t == 0:
            return t
    return rows


def linear(x, w, b):
    """x: (rows, d_in), w: (d_in, d_out), b: (1, d_out) -> (rows, d_out)."""
    rows, d_in = x.shape
    d_out = w.shape[1]
    tm = _pick_row_tile(rows)
    return pl.pallas_call(
        _linear_kernel,
        out_shape=jax.ShapeDtypeStruct((rows, d_out), x.dtype),
        grid_spec=pltpu.PrefetchScalarGridSpec(
            num_scalar_prefetch=0,
            grid=(rows // tm,),
            in_specs=[
                pl.BlockSpec((tm, d_in), lambda i: (i, 0)),
                pl.BlockSpec((d_in, d_out), lambda i: (0, 0)),
                pl.BlockSpec((1, d_out), lambda i: (0, 0)),
            ],
            out_specs=pl.BlockSpec((tm, d_out), lambda i: (i, 0)),
        ),
        compiler_params=pltpu.CompilerParams(
            dimension_semantics=("parallel",)),
    )(x, w, b)


def scaled_dot_product_attention(q, k, v, temperature):
    """q: (HB, Lq, dk), k: (HB, Lk, dk), v: (HB, Lk, dv) -> (out, attn)."""
    HB, Lq, dk = q.shape
    _, Lk, _ = k.shape
    dv = v.shape[2]

    # Pack as many (head, batch) pairs per grid step as a ~4 MiB f32 attn tile
    # allows (amortizes per-step overhead; one step at the toy shape).
    budget = 4 << 20
    bb = HB
    while bb > 1 and (HB % bb != 0 or bb * Lq * Lk * 4 > budget):
        bb -= 1

    kernel = functools.partial(_mha_sdpa_kernel,
                               inv_temperature=1.0 / float(temperature))
    out, attn = pl.pallas_call(
        kernel,
        out_shape=(
            jax.ShapeDtypeStruct((HB, Lq, dv), q.dtype),
            jax.ShapeDtypeStruct((HB, Lq, Lk), q.dtype),
        ),
        grid_spec=pltpu.PrefetchScalarGridSpec(
            num_scalar_prefetch=0,
            grid=(HB // bb,),
            in_specs=[
                pl.BlockSpec((bb, Lq, dk), lambda i: (i, 0, 0)),
                pl.BlockSpec((bb, Lk, dk), lambda i: (i, 0, 0)),
                pl.BlockSpec((bb, Lk, dv), lambda i: (i, 0, 0)),
            ],
            out_specs=(
                pl.BlockSpec((bb, Lq, dv), lambda i: (i, 0, 0)),
                pl.BlockSpec((bb, Lq, Lk), lambda i: (i, 0, 0)),
            ),
        ),
        compiler_params=pltpu.CompilerParams(
            dimension_semantics=("parallel",)),
    )(q, k, v)
    return out, attn


def post_attention_ffn(xcat, residual, p, eps=1e-5):
    """Fused fc + residual + LN + FFN + residual + LN over row tiles."""
    rows, dcat = xcat.shape
    d_model = residual.shape[1]
    d_inner = p["w1"].shape[1]
    tm = _pick_row_tile(rows)

    def rowmap(i):
        return (i, 0)

    def fullmap(i):
        return (0, 0)

    kernel = functools.partial(_post_attn_ffn_kernel, eps=eps)
    return pl.pallas_call(
        kernel,
        out_shape=jax.ShapeDtypeStruct((rows, d_model), residual.dtype),
        grid_spec=pltpu.PrefetchScalarGridSpec(
            num_scalar_prefetch=0,
            grid=(rows // tm,),
            in_specs=[
                pl.BlockSpec((tm, dcat), rowmap),        # attention concat
                pl.BlockSpec((tm, d_model), rowmap),     # residual (q_input)
                pl.BlockSpec((dcat, d_model), fullmap),  # w_fc
                pl.BlockSpec((1, d_model), fullmap),     # b_fc
                pl.BlockSpec((1, d_model), fullmap),     # ln1 gamma
                pl.BlockSpec((1, d_model), fullmap),     # ln1 beta
                pl.BlockSpec((d_model, d_inner), fullmap),  # w1
                pl.BlockSpec((1, d_inner), fullmap),        # b1
                pl.BlockSpec((d_inner, d_model), fullmap),  # w2
                pl.BlockSpec((1, d_model), fullmap),        # b2
                pl.BlockSpec((1, d_model), fullmap),     # ln2 gamma
                pl.BlockSpec((1, d_model), fullmap),     # ln2 beta
            ],
            out_specs=pl.BlockSpec((tm, d_model), rowmap),
        ),
        compiler_params=pltpu.CompilerParams(
            dimension_semantics=("parallel",)),
    )(xcat, residual,
      p["w_fc"], p["b_fc"], p["ln1_g"], p["ln1_b"],
      p["w1"], p["b1"], p["w2"], p["b2"], p["ln2_g"], p["ln2_b"])


# ---------------------------------------------------------------------------
# EncoderLayer forward
# ---------------------------------------------------------------------------

def encoder_layer_forward(params, q_input, k_input, v_input,
                          non_pad_mask=None, slf_attn_mask=None):
    # Masks are accepted but unused, exactly like the reference module
    # (ScaledDotProductAttention.forward ignores `mask`).
    del non_pad_mask, slf_attn_mask
    H, dk, dv = params["n_head"], params["d_k"], params["d_v"]
    B, Lq, d_model = q_input.shape
    Lk = k_input.shape[1]
    Lv = v_input.shape[1]

    q2d = q_input.reshape(B * Lq, d_model)
    k2d = k_input.reshape(B * Lk, d_model)
    v2d = v_input.reshape(B * Lv, d_model)

    qp = linear(q2d, params["w_qs"], params["b_qs"])   # (B*Lq, H*dk)
    kp = linear(k2d, params["w_ks"], params["b_ks"])   # (B*Lk, H*dk)
    vp = linear(v2d, params["w_vs"], params["b_vs"])   # (B*Lv, H*dv)

    # Head split + permute(2,0,1,3) + merge, as in the torch module
    # (wrapper-side layout plumbing only).
    qh = qp.reshape(B, Lq, H, dk).transpose(2, 0, 1, 3).reshape(H * B, Lq, dk)
    kh = kp.reshape(B, Lk, H, dk).transpose(2, 0, 1, 3).reshape(H * B, Lk, dk)
    vh = vp.reshape(B, Lv, H, dv).transpose(2, 0, 1, 3).reshape(H * B, Lv, dv)

    temperature = float(dk) ** 0.5
    out_h, attn = scaled_dot_product_attention(qh, kh, vh, temperature)

    # (H*B, Lq, dv) -> (B, Lq, H*dv)
    xcat = (out_h.reshape(H, B, Lq, dv)
            .transpose(1, 2, 0, 3)
            .reshape(B * Lq, H * dv))

    enc2d = post_attention_ffn(xcat, q2d, params)
    return enc2d.reshape(B, Lq, d_model), attn


# ---------------------------------------------------------------------------
# Parameters and pure-JAX reference
# ---------------------------------------------------------------------------

def init_params(key, d_model, d_inner, n_head, d_k, d_v, dtype=jnp.float32):
    ks = jax.random.split(key, 12)

    def nrm(k, shape, s):
        return (s * jax.random.normal(k, shape)).astype(dtype)

    s_qk = (2.0 / (d_model + d_k)) ** 0.5
    s_v = (2.0 / (d_model + d_v)) ** 0.5
    return {
        "n_head": n_head, "d_k": d_k, "d_v": d_v,
        "w_qs": nrm(ks[0], (d_model, n_head * d_k), s_qk),
        "b_qs": nrm(ks[1], (1, n_head * d_k), 0.02),
        "w_ks": nrm(ks[2], (d_model, n_head * d_k), s_qk),
        "b_ks": nrm(ks[3], (1, n_head * d_k), 0.02),
        "w_vs": nrm(ks[4], (d_model, n_head * d_v), s_v),
        "b_vs": nrm(ks[5], (1, n_head * d_v), 0.02),
        "w_fc": nrm(ks[6], (n_head * d_v, d_model),
                    (2.0 / (n_head * d_v + d_model)) ** 0.5),
        "b_fc": nrm(ks[7], (1, d_model), 0.02),
        "ln1_g": jnp.ones((1, d_model), dtype),
        "ln1_b": jnp.zeros((1, d_model), dtype),
        "w1": nrm(ks[8], (d_model, d_inner), (2.0 / (d_model + d_inner)) ** 0.5),
        "b1": nrm(ks[9], (1, d_inner), 0.02),
        "w2": nrm(ks[10], (d_inner, d_model), (2.0 / (d_model + d_inner)) ** 0.5),
        "b2": nrm(ks[11], (1, d_model), 0.02),
        "ln2_g": jnp.ones((1, d_model), dtype),
        "ln2_b": jnp.zeros((1, d_model), dtype),
    }


def _reference_encoder_layer(params, q_input, k_input, v_input):
    H, dk, dv = params["n_head"], params["d_k"], params["d_v"]
    B, Lq, d_model = q_input.shape
    Lk = k_input.shape[1]
    Lv = v_input.shape[1]

    q2d = q_input.reshape(B * Lq, d_model)
    k2d = k_input.reshape(B * Lk, d_model)
    v2d = v_input.reshape(B * Lv, d_model)

    qp = q2d @ params["w_qs"] + params["b_qs"]
    kp = k2d @ params["w_ks"] + params["b_ks"]
    vp = v2d @ params["w_vs"] + params["b_vs"]

    qh = qp.reshape(B, Lq, H, dk).transpose(2, 0, 1, 3).reshape(H * B, Lq, dk)
    kh = kp.reshape(B, Lk, H, dk).transpose(2, 0, 1, 3).reshape(H * B, Lk, dk)
    vh = vp.reshape(B, Lv, H, dv).transpose(2, 0, 1, 3).reshape(H * B, Lv, dv)

    temperature = float(dk) ** 0.5
    scores = jnp.einsum("bqd,bkd->bqk", qh, kh) / temperature
    attn = jax.nn.softmax(scores, axis=-1)
    out_h = jnp.einsum("bqk,bkd->bqd", attn, vh)

    xcat = (out_h.reshape(H, B, Lq, dv)
            .transpose(1, 2, 0, 3)
            .reshape(B * Lq, H * dv))

    def ln(x, g, b, eps=1e-5):
        mean = jnp.mean(x, axis=-1, keepdims=True)
        xc = x - mean
        var = jnp.mean(xc * xc, axis=-1, keepdims=True)
        return xc * jax.lax.rsqrt(var + eps) * g + b

    h = xcat @ params["w_fc"] + params["b_fc"] + q2d
    y1 = ln(h, params["ln1_g"], params["ln1_b"])
    f = jnp.maximum(y1 @ params["w1"] + params["b1"], 0.0)
    f = f @ params["w2"] + params["b2"]
    y2 = ln(f + y1, params["ln2_g"], params["ln2_b"])
    return y2.reshape(B, Lq, d_model), attn


if __name__ == "__main__":
    key = jax.random.PRNGKey(0)
    k_par, k_q, k_k, k_v = jax.random.split(key, 4)

    B, L = 2, 8
    d_model, d_inner, n_head, d_k, d_v = 128, 256, 4, 32, 32

    params = init_params(k_par, d_model, d_inner, n_head, d_k, d_v)
    q_in = jax.random.normal(k_q, (B, L, d_model), dtype=jnp.float32)
    k_in = jax.random.normal(k_k, (B, L, d_model), dtype=jnp.float32)
    v_in = jax.random.normal(k_v, (B, L, d_model), dtype=jnp.float32)

    enc_out, attn = encoder_layer_forward(params, q_in, k_in, v_in)
    enc_out = jax.block_until_ready(enc_out)
    attn = jax.block_until_ready(attn)

    enc_ref, attn_ref = _reference_encoder_layer(params, q_in, k_in, v_in)

    assert enc_out.shape == (B, L, d_model)
    assert attn.shape == (n_head * B, L, L)
    assert jnp.allclose(attn, attn_ref, atol=2e-4, rtol=2e-4), (
        "attn mismatch, max abs err = %g"
        % float(jnp.max(jnp.abs(attn - attn_ref))))
    assert jnp.allclose(enc_out, enc_ref, atol=2e-4, rtol=2e-4), (
        "enc_output mismatch, max abs err = %g"
        % float(jnp.max(jnp.abs(enc_out - enc_ref))))

    print("KERNEL_OK")
</pallas_src>

<mosaic_0001>
module attributes {stable_mosaic.version = 11 : i64} {
  func.func @_linear_kernel(%arg0: i32, %arg1: memref<16x128xf32, #tpu.memory_space<vmem>>, %arg2: memref<128x128xf32, #tpu.memory_space<vmem>>, %arg3: memref<1x128xf32, #tpu.memory_space<vmem>>, %arg4: memref<16x128xf32, #tpu.memory_space<vmem>>) attributes {dimension_semantics = [#tpu.dimension_semantics<parallel>], iteration_bounds = array<i64: 1>, scalar_prefetch = 0 : i64, scratch_operands = 0 : i64, tpu.core_type = #tpu.core_type<tc>, window_params = [{transform_indices = @transform_0, window_bounds = array<i64: 16, 128>}, {pipeline_mode = #tpu.pipeline_mode<synchronous>, transform_indices = @transform_1, window_bounds = array<i64: 128, 128>}, {pipeline_mode = #tpu.pipeline_mode<synchronous>, transform_indices = @transform_2, window_bounds = array<i64: 1, 128>}, {transform_indices = @transform_3, window_bounds = array<i64: 16, 128>}]} {
    %c0 = arith.constant 0 : index
    %c0_0 = arith.constant 0 : index
    %0 = vector.load %arg1[%c0, %c0_0] : memref<16x128xf32, #tpu.memory_space<vmem>>, vector<16x128xf32>
    %c0_1 = arith.constant 0 : index
    %c0_2 = arith.constant 0 : index
    %1 = vector.load %arg2[%c0_1, %c0_2] : memref<128x128xf32, #tpu.memory_space<vmem>>, vector<128x128xf32>
    %cst = arith.constant dense<0.000000e+00> : vector<16x128xf32>
    %2 = tpu.matmul %0, %1, %cst {dimension_numbers = #tpu.dot_dimension_numbers<[1], [0], [0], [1], [0, 0, 1, 1], [], []>} : vector<16x128xf32>, vector<128x128xf32>, vector<16x128xf32> -> vector<16x128xf32>
    %c0_3 = arith.constant 0 : index
    %c0_4 = arith.constant 0 : index
    %3 = vector.load %arg3[%c0_3, %c0_4] : memref<1x128xf32, #tpu.memory_space<vmem>>, vector<1x128xf32>
    %4 = vector.broadcast %3 : vector<1x128xf32> to vector<16x128xf32>
    %5 = arith.addf %2, %4 : vector<16x128xf32>
    %c0_5 = arith.constant 0 : index
    %c0_6 = arith.constant 0 : index
    %6 = vector.load %arg4[%c0_5, %c0_6] : memref<16x128xf32, #tpu.memory_space<vmem>>, vector<16x128xf32>
    tpu.vector_store %arg4[%c0_5, %c0_6], %5 {strides = array<i32>} : memref<16x128xf32, #tpu.memory_space<vmem>>, vector<16x128xf32>,
    return
  }
  func.func @transform_0(%arg0: i32) -> (i32, i32) {
    %c0_i32 = arith.constant 0 : i32
    %c0_i32_0 = arith.constant 0 : i32
    return %arg0, %c0_i32 : i32, i32
  }
  func.func @transform_1(%arg0: i32) -> (i32, i32) {
    %c0_i32 = arith.constant 0 : i32
    %c0_i32_0 = arith.constant 0 : i32
    %c0_i32_1 = arith.constant 0 : i32
    return %c0_i32, %c0_i32_0 : i32, i32
  }
  func.func @transform_2(%arg0: i32) -> (i32, i32) {
    %c0_i32 = arith.constant 0 : i32
    %c0_i32_0 = arith.constant 0 : i32
    %c0_i32_1 = arith.constant 0 : i32
    return %c0_i32, %c0_i32_0 : i32, i32
  }
  func.func @transform_3(%arg0: i32) -> (i32, i32) {
    %c0_i32 = arith.constant 0 : i32
    %c0_i32_0 = arith.constant 0 : i32
    return %arg0, %c0_i32 : i32, i32
  }
}

</mosaic_0001>

<llo_original>
// kernel: tpu_custom_call.1
$region0: #{tpu_custom_call.1}
  #allocation0 [shape = 'u32[]', space=smem, size = 0x4, offset = 0x4, fixed_abs, tag = 'smem constant byte address 0x4 - core index']
  #allocation1 [shape = 'u32[144,128]{1,0:T(1,128)}', space=vmem, size = 0x12000, scoped, tag = 'internal scratch']
  %s0 = inlined_call_operand.hbm [shape: f32[16,128], index: 0, kind: input, shape index: {}]
  %s1 = inlined_call_operand.hbm [shape: f32[128,128], index: 1, kind: input, shape index: {}]
  %s2 = inlined_call_operand.vmem [shape: f32[1,128], index: 2, kind: input, shape index: {}]
  %s3 = inlined_call_operand.hbm [shape: f32[16,128], index: 3, kind: output, shape index: {}]
  %s4 = sld [smem:[#allocation0]]
  $region30: #{tpu_custom_call.1} parent=0
    _
  %s6 = ssub.s32 1, %s4
  %s7 = scalar_select 0, %s6, %s4
  $region1: #{tpu_custom_call.1} parent=0
    #allocation2 [shape = 'u8[8192]{0}', space=vmem, size = 0x2000, scoped, tag = 'input window, operand 0, single buffered']
    #allocation3 [shape = 's32[1]{0}', space=sflag, size = 0x4, scoped, tag = 'scoped memory for tpu_custom_call.1']
    #allocation4 [shape = 's32[1]{0}', space=sflag, size = 0x4, scoped, tag = 'scoped memory for tpu_custom_call.1']
    #allocation5 [shape = 'u8[65536]{0}', space=vmem, size = 0x10000, scoped, tag = 'input window, operand 1, single buffered']
    #allocation6 [shape = 's32[1]{0}', space=sflag, size = 0x4, scoped, tag = 'scoped memory for tpu_custom_call.1']
    #allocation7 [shape = 'u8[8192]{0}', space=vmem, size = 0x2000, scoped, tag = 'output window, operand 0, single buffered']
    %8 = vsyncpa [#allocation3], 0
    %9 = vsyncpa [#allocation6], 0
    %10 = vsyncpa [#allocation4], 0
    // Predicated region
    $region2: #{tpu_custom_call.1} parent=1 // pred_check
      _
    $region3: #{tpu_custom_call.1} parent=1 // pred_check_branch
      %12 = sbr.rel (0) target = $region5
    $region4: #{tpu_custom_call.1} parent=1 // pred_region
      %s14 = ssub.s32 256, 256
      %15 = vsyncadd [#allocation3], %s14
      %s16 = sshll.u32 [#allocation2], 4
      %s17 = int_to_ptr.vmem [resolvable:$true] %s16
      %22 = dma.hbm_to_vmem [thread:$0]  %s0, 256, %s17, [#allocation3], 128, 128, 8
    $region5: #{tpu_custom_call.1} parent=1 // pred_fallthru
      _
    // Predicated region
    $region6: #{tpu_custom_call.1} parent=1 // pred_check
      _
    $region7: #{tpu_custom_call.1} parent=1 // pred_check_branch
      %24 = sbr.rel (0) target = $region9
    $region8: #{tpu_custom_call.1} parent=1 // pred_region
      %s26 = ssub.s32 2048, 2048
      %27 = vsyncadd [#allocation6], %s26
      %s28 = sshll.u32 [#allocation5], 4
      %s29 = int_to_ptr.vmem [resolvable:$true] %s28
      %34 = dma.hbm_to_vmem [thread:$0]  %s1, 2048, %s29, [#allocation6], 128, 128, 8
    $region9: #{tpu_custom_call.1} parent=1 // pred_fallthru
      _
    // Predicated region
    $region10: #{tpu_custom_call.1} parent=1 // pred_check
      _
    $region11: #{tpu_custom_call.1} parent=1 // pred_check_branch
      %36 = sbr.rel (0) target = $region13
    $region12: #{tpu_custom_call.1} parent=1 // pred_region
      _
    $region13: #{tpu_custom_call.1} parent=1 // pred_fallthru
      _
    // Predicated region
    $region14: #{tpu_custom_call.1} parent=1 // pred_check
      _
    $region15: #{tpu_custom_call.1} parent=1 // pred_check_branch
      %38 = sbr.rel (0) target = $region17
    $region16: #{tpu_custom_call.1} parent=1 // pred_region
      %39 = dma.done [#allocation3], 256
    $region17: #{tpu_custom_call.1} parent=1 // pred_fallthru
      _
    // Predicated region
    $region18: #{tpu_custom_call.1} parent=1 // pred_check
      _
    $region19: #{tpu_custom_call.1} parent=1 // pred_check_branch
      %41 = sbr.rel (0) target = $region21
    $region20: #{tpu_custom_call.1} parent=1 // pred_region
      %42 = dma.done [#allocation6], 2048
    $region21: #{tpu_custom_call.1} parent=1 // pred_fallthru
      _
    %v43 = vld [vmem:[#allocation2] sm:$0xff]
    %v44 = vld [vmem:[#allocation2 + $0x8] sm:$0xff]
    %v45 = vld [vmem:[#allocation5] sm:$0xff]
    %v46 = vld [vmem:[#allocation5 + $0x8] sm:$0xff]
    %v47 = vld [vmem:[#allocation5 + $0x10] sm:$0xff]
    %v48 = vld [vmem:[#allocation5 + $0x18] sm:$0xff]
    %v49 = vld [vmem:[#allocation5 + $0x20] sm:$0xff]
    %v50 = vld [vmem:[#allocation5 + $0x28] sm:$0xff]
    %v51 = vld [vmem:[#allocation5 + $0x30] sm:$0xff]
    %v52 = vld [vmem:[#allocation5 + $0x38] sm:$0xff]
    %v53 = vld [vmem:[#allocation5 + $0x40] sm:$0xff]
    %v54 = vld [vmem:[#allocation5 + $0x48] sm:$0xff]
    %v55 = vld [vmem:[#allocation5 + $0x50] sm:$0xff]
    %v56 = vld [vmem:[#allocation5 + $0x58] sm:$0xff]
    %v57 = vld [vmem:[#allocation5 + $0x60] sm:$0xff]
    %v58 = vld [vmem:[#allocation5 + $0x68] sm:$0xff]
    %v59 = vld [vmem:[#allocation5 + $0x70] sm:$0xff]
    %v60 = vld [vmem:[#allocation5 + $0x78] sm:$0xff]
    %v61 = vld [vmem:[%s2] sm:$0x1]
    %v63 = vlaneseq
    %v64 = vshrl.u32 %v63, 7
    %v65 = vsub.s32 0, %v64
    %v66 = vrot.slane %v61, %v65
    %68 = vmatprep.subr.mxu0 0.0
    %69 = vmatpush1.msra.mxu0 %v45
    %70 = vmatprep.subr.mxu0 0.0
    %71 = vmatpush1.msra.mxu0 %v46
    %72 = vmatprep.subr.mxu0 0.0
    %73 = vmatpush1.msra.mxu0 %v47
    %74 = vmatprep.subr.mxu0 0.0
    %75 = vmatpush1.msra.mxu0 %v48
    %76 = vmatprep.subr.mxu0 0.0
    %77 = vmatpush1.msra.mxu0 %v49
    %78 = vmatprep.subr.mxu0 0.0
    %79 = vmatpush1.msra.mxu0 %v50
    %80 = vmatprep.subr.mxu0 0.0
    %81 = vmatpush1.msra.mxu0 %v51
    %82 = vmatprep.subr.mxu0 0.0
    %83 = vmatpush1.msra.mxu0 %v52
    %84 = vmatprep.subr.mxu0 0.0
    %85 = vmatpush1.msra.mxu0 %v53
    %86 = vmatprep.subr.mxu0 0.0
    %87 = vmatpush1.msra.mxu0 %v54
    %88 = vmatprep.subr.mxu0 0.0
    %89 = vmatpush1.msra.mxu0 %v55
    %90 = vmatprep.subr.mxu0 0.0
    %91 = vmatpush1.msra.mxu0 %v56
    %92 = vmatprep.subr.mxu0 0.0
    %93 = vmatpush1.msra.mxu0 %v57
    %94 = vmatprep.subr.mxu0 0.0
    %95 = vmatpush1.msra.mxu0 %v58
    %96 = vmatprep.subr.mxu0 0.0
    %97 = vmatpush1.msra.mxu0 %v59
    %98 = vmatprep.subr.mxu0 0.0
    %99 = vmatpush1.msra.mxu0 %v60
    %100 = vmatprep.subr.mxu0 0.0
    %101 = vmatpush1.msra.mxu0 0.0
    %102 = vmatprep.subr.mxu0 0.0
    %103 = vmatpush1.msra.mxu0 0.0
    %104 = vmatprep.subr.mxu0 0.0
    %105 = vmatpush1.msra.mxu0 0.0
    %106 = vmatprep.subr.mxu0 0.0
    %107 = vmatpush1.msra.mxu0 0.0
    %108 = vmatprep.subr.mxu0 0.0
    %109 = vmatpush1.msra.mxu0 0.0
    %110 = vmatprep.subr.mxu0 0.0
    %111 = vmatpush1.msra.mxu0 0.0
    %112 = vmatprep.subr.mxu0 0.0
    %113 = vmatpush1.msra.mxu0 0.0
    %114 = vmatprep.subr.mxu0 0.0
    %115 = vmatpush1.msra.mxu0 0.0
    %116 = vmatprep.subr.mxu0 0.0
    %117 = vmatpush1.msra.mxu0 0.0
    %118 = vmatprep.subr.mxu0 0.0
    %119 = vmatpush1.msra.mxu0 0.0
    %120 = vmatprep.subr.mxu0 0.0
    %121 = vmatpush1.msra.mxu0 0.0
    %122 = vmatprep.subr.mxu0 0.0
    %123 = vmatpush1.msra.mxu0 0.0
    %124 = vmatprep.subr.mxu0 0.0
    %125 = vmatpush1.msra.mxu0 0.0
    %126 = vmatprep.subr.mxu0 0.0
    %127 = vmatpush1.msra.mxu0 0.0
    %128 = vmatprep.subr.mxu0 0.0
    %129 = vmatpush1.msra.mxu0 0.0
    %130 = vmatprep.subr.mxu0 0.0
    %131 = vmatpush1.msra.mxu0 0.0
    %132 = vmatprep.mubr.f32.mxu0 0.0
    %133 = vmatmul.mubr.f32.gmra.mrb[0].mxu0 %v43
    %v134 = vpop.f32.mrb[0].mxu0
    %v135 = vadd.f32 %v66, %v134
    %v136 = vpop.f32.mrb[0].mxu0
    %137 = vmatprep.mubr.f32.mxu0 0.0
    %138 = vmatmul.mubr.f32.gmra.mrb[0].mxu0 %v44
    %v139 = vpop.f32.mrb[0].mxu0
    %v140 = vadd.f32 %v66, %v139
    %v141 = vpop.f32.mrb[0].mxu0
    %142 = vdwg.mxu0
    %143 = vst [vmem:[#allocation7] sm:$0xff] %v135
    %144 = vst [vmem:[#allocation7 + $0x8] sm:$0xff] %v140
    // Predicated region
    $region22: #{tpu_custom_call.1} parent=1 // pred_check
      _
    $region23: #{tpu_custom_call.1} parent=1 // pred_check_branch
      %146 = sbr.rel (0) target = $region25
    $region24: #{tpu_custom_call.1} parent=1 // pred_region
      %s148 = ssub.s32 256, 256
      %149 = vsyncadd [#allocation4], %s148
      %s150 = sshll.u32 [#allocation7], 4
      %s151 = int_to_ptr.vmem [resolvable:$true] %s150
      %156 = dma.vmem_to_hbm [thread:$0]  %s151, 256, %s3, [#allocation4], 128, 128, 8
    $region25: #{tpu_custom_call.1} parent=1 // pred_fallthru
      _
    // Predicated region
    $region26: #{tpu_custom_call.1} parent=1 // pred_check
      _
    $region27: #{tpu_custom_call.1} parent=1 // pred_check_branch
      %158 = sbr.rel (0) target = $region29
    $region28: #{tpu_custom_call.1} parent=1 // pred_region
      %159 = dma.done [#allocation4], 256
    $region29: #{tpu_custom_call.1} parent=1 // pred_fallthru
      _
    %160 = vsyncpa [#allocation3], 1
    %161 = vsyncpa [#allocation6], 1
    %162 = vsyncpa [#allocation4], 1

</llo_original>
